<compile_context>
chip_gen: v6e
topology: v6e:2x2x1
jax: 0.10.0
libtpu: 0.0.40
codegen_flags: <defaults>
</compile_context>

<pallas_src>
import functools

import jax
import jax.numpy as jnp
import numpy as np
from jax.experimental import pallas as pl
from jax.experimental.pallas import tpu as pltpu


# ---------------------------------------------------------------------------
# Fused Pallas kernel
# ---------------------------------------------------------------------------
def _gated_attention_kernel(x_ref, wcat_ref, bcat_ref, w2_ref, b2_ref, out_ref):
    # x_ref:    [TM, 128]      row tile of the input (TM multiple of 128)
    # wcat_ref: [R, 128]       concat([W1, W], axis=0), R = 128 + C   (resident)
    # bcat_ref: [R, 1]         concat([b1, bias]) as a column
    # w2_ref:   [128, 1]       attention_U second-linear weight as a column
    # b2_ref:   [1, 1] (SMEM)  attention_U second-linear bias (scalar)
    # out_ref:  [C+1, TM]      rows 0..C-1 = logits^T, row C = A_U^T   (lane-dense)
    H = 128

    # Single fused MXU contraction:  [R,128] x [TM,128]^T -> [R, TM]
    cat = jax.lax.dot_general(
        wcat_ref[...], x_ref[...],
        dimension_numbers=(((1,), (1,)), ((), ())),
        preferred_element_type=jnp.float32)
    cat = cat + bcat_ref[...]                       # fused b1 / bias add (col broadcast)

    # attention_U branch: ReLU -> 128->1 projection (sublane reduce) -> sigmoid (EUP)
    h = jnp.maximum(cat[:H, :], 0.0)                                     # [128, TM]
    s = jnp.sum(h * w2_ref[...], axis=0, keepdims=True) + b2_ref[0, 0]   # [1, TM]
    gate = jax.nn.sigmoid(s)                                             # [1, TM]

    # Pack logits^T (rows 0..C-1) and A_U^T (row C) into one lane-dense store.
    packed = jnp.concatenate([cat[H:, :], gate], axis=0)                 # [C+1, TM]
    out_ref[...] = packed.astype(out_ref.dtype)


# ---------------------------------------------------------------------------
# Wrapper
# ---------------------------------------------------------------------------
def _round_up(v, m):
    return (v + m - 1) // m * m


def gated_attention_forward(x, params, w, bias, tile_m=512):
    """x: [M, 128], w: [C, 128], bias: [C] -> (A_U [M, 1], slice_logits [M, C])."""
    M, K = x.shape
    assert K == 128, "GatedAttention expects a 128-dim input (hidden=128)."
    C = w.shape[0]
    R = 128 + C

    # --- tiling: lane axis of the output is the row dim, so the tile must be a
    #     multiple of 128; cap it so the parallel grid has >= 2 steps when possible
    #     (keeps both v7x TensorCores busy; harmless on v5e/v6e).
    Mp0 = _round_up(M, 128)
    tile_req = max(128, (int(tile_m) // 128) * 128)
    if Mp0 >= 256:
        tile = min(tile_req, _round_up(Mp0 // 2, 128))
    else:
        tile = Mp0
    Mp = _round_up(Mp0, tile)
    grid = (Mp // tile,)

    xp = x if Mp == M else jnp.pad(x, ((0, Mp - M), (0, 0)))

    # Fused resident weights / biases (tiny, stay in VMEM across all grid steps).
    wcat = jnp.concatenate([params["u1_w"], w], axis=0)                     # [R, 128]
    bcat = jnp.concatenate([params["u1_b"], bias], axis=0).reshape(R, 1)    # [R, 1]
    w2 = params["u2_w"].reshape(128, 1)                                     # [128, 1]
    b2 = params["u2_b"].reshape(1, 1)                                       # [1, 1]

    out_t = pl.pallas_call(
        _gated_attention_kernel,
        out_shape=jax.ShapeDtypeStruct((C + 1, Mp), x.dtype),
        grid=grid,
        in_specs=[
            pl.BlockSpec((tile, 128), lambda i: (i, 0)),                 # x row tile
            pl.BlockSpec((R, 128), lambda i: (0, 0)),                    # Wcat (resident)
            pl.BlockSpec((R, 1), lambda i: (0, 0)),                      # fused bias col
            pl.BlockSpec((128, 1), lambda i: (0, 0)),                    # w2 col
            pl.BlockSpec(memory_space=pltpu.MemorySpace.SMEM),           # b2 scalar
        ],
        out_specs=pl.BlockSpec((C + 1, tile), lambda i: (0, i)),         # lane-dense slab
        compiler_params=pltpu.CompilerParams(
            dimension_semantics=("parallel",)),                          # rows independent
    )(xp, wcat, bcat, w2, b2)

    # Back to the module's layout (one small transpose of M*(C+1) elements; downstream
    # could consume `out_t` directly to avoid it).
    slice_logits = out_t[:C, :M].T          # [M, C]
    a_u = out_t[C:, :M].T                   # [M, 1]
    # TODO(synk): the original forward's `print('A_U', A_U.shape)` debug side-effect is
    # omitted so stdout stays exactly "KERNEL_OK" (the shape is static anyway).
    return a_u, slice_logits


# ---------------------------------------------------------------------------
# Pure-JAX reference (for verification)
# ---------------------------------------------------------------------------
def _ref_forward(x, params, w, bias):
    h = jax.nn.relu(x @ params["u1_w"].T + params["u1_b"])
    a_u = jax.nn.sigmoid(h @ params["u2_w"].T + params["u2_b"])
    logits = x @ w.T + bias
    return a_u, logits


# ---------------------------------------------------------------------------
if __name__ == "__main__":
    N, HIDDEN, C_OUT = 256, 128, 16      # hidden=128 is fixed by the module

    key = jax.random.PRNGKey(0)
    k1, k2, k3, k4, k5, k6, kx = jax.random.split(key, 7)

    params = {
        "u1_w": 0.1 * jax.random.normal(k1, (HIDDEN, HIDDEN), jnp.float32),
        "u1_b": 0.05 * jax.random.normal(k2, (HIDDEN,), jnp.float32),
        "u2_w": 0.1 * jax.random.normal(k3, (1, HIDDEN), jnp.float32),
        "u2_b": 0.05 * jax.random.normal(k4, (1,), jnp.float32),
    }
    w = 0.1 * jax.random.normal(k5, (C_OUT, HIDDEN), jnp.float32)
    bias = 0.05 * jax.random.normal(k6, (C_OUT,), jnp.float32)
    x = jax.random.normal(kx, (N, HIDDEN), jnp.float32)

    fwd = jax.jit(functools.partial(gated_attention_forward, tile_m=512))
    a_u, logits = fwd(x, params, w, bias)
    a_u, logits = jax.block_until_ready((a_u, logits))

    assert a_u.shape == (N, 1) and logits.shape == (N, C_OUT)

    ref_a_u, ref_logits = _ref_forward(x, params, w, bias)
    np.testing.assert_allclose(np.asarray(a_u), np.asarray(ref_a_u), atol=1e-2, rtol=1e-2)
    np.testing.assert_allclose(np.asarray(logits), np.asarray(ref_logits), atol=1e-2, rtol=1e-2)

    print("KERNEL_OK")
</pallas_src>

<mosaic_0001>
module attributes {stable_mosaic.version = 11 : i64} {
  func.func @_gated_attention_kernel(%arg0: i32, %arg1: memref<128x128xf32, #tpu.memory_space<vmem>>, %arg2: memref<144x128xf32, #tpu.memory_space<vmem>>, %arg3: memref<144x1xf32, #tpu.memory_space<vmem>>, %arg4: memref<128x1xf32, #tpu.memory_space<vmem>>, %arg5: memref<1x1xf32, #tpu.memory_space<smem>>, %arg6: memref<17x128xf32, #tpu.memory_space<vmem>>) attributes {dimension_semantics = [#tpu.dimension_semantics<parallel>], iteration_bounds = array<i64: 2>, scalar_prefetch = 0 : i64, scratch_operands = 0 : i64, tpu.core_type = #tpu.core_type<tc>, window_params = [{transform_indices = @transform_0, window_bounds = array<i64: 128, 128>}, {pipeline_mode = #tpu.pipeline_mode<synchronous>, transform_indices = @transform_1, window_bounds = array<i64: 144, 128>}, {pipeline_mode = #tpu.pipeline_mode<synchronous>, transform_indices = @transform_2, window_bounds = array<i64: 144, 1>}, {pipeline_mode = #tpu.pipeline_mode<synchronous>, transform_indices = @transform_3, window_bounds = array<i64: 128, 1>}, {transform_indices = @transform_4, window_bounds = array<i64: 1, 1>}, {transform_indices = @transform_5, window_bounds = array<i64: 17, 128>}]} {
    %c0 = arith.constant 0 : index
    %c0_0 = arith.constant 0 : index
    %0 = vector.load %arg2[%c0, %c0_0] : memref<144x128xf32, #tpu.memory_space<vmem>>, vector<144x128xf32>
    %c0_1 = arith.constant 0 : index
    %c0_2 = arith.constant 0 : index
    %1 = vector.load %arg1[%c0_1, %c0_2] : memref<128x128xf32, #tpu.memory_space<vmem>>, vector<128x128xf32>
    %cst = arith.constant dense<0.000000e+00> : vector<144x128xf32>
    %2 = tpu.matmul %0, %1, %cst {dimension_numbers = #tpu.dot_dimension_numbers<[1], [1], [0], [0], [0, 0, 1, 0], [], []>} : vector<144x128xf32>, vector<128x128xf32>, vector<144x128xf32> -> vector<144x128xf32>
    %c0_3 = arith.constant 0 : index
    %c0_4 = arith.constant 0 : index
    %3 = vector.load %arg3[%c0_3, %c0_4] : memref<144x1xf32, #tpu.memory_space<vmem>>, vector<144x1xf32>
    %4 = vector.broadcast %3 : vector<144x1xf32> to vector<144x128xf32>
    %5 = arith.addf %2, %4 : vector<144x128xf32>
    %6 = vector.extract_strided_slice %5 {offsets = [0, 0], sizes = [128, 128], strides = [1, 1]} : vector<144x128xf32> to vector<128x128xf32>
    %cst_5 = arith.constant 0.000000e+00 : f32
    %7 = vector.broadcast %cst_5 : f32 to vector<128x128xf32>
    %8 = arith.maximumf %6, %7 : vector<128x128xf32>
    %c0_6 = arith.constant 0 : index
    %c0_7 = arith.constant 0 : index
    %9 = vector.load %arg4[%c0_6, %c0_7] : memref<128x1xf32, #tpu.memory_space<vmem>>, vector<128x1xf32>
    %10 = vector.broadcast %9 : vector<128x1xf32> to vector<128x128xf32>
    %11 = arith.mulf %8, %10 : vector<128x128xf32>
    %cst_8 = arith.constant dense<0.000000e+00> : vector<128xf32>
    %12 = vector.multi_reduction <add>, %11, %cst_8 [0] : vector<128x128xf32> to vector<128xf32>
    %13 = vector.shape_cast %12 : vector<128xf32> to vector<1x128xf32>
    %c0_9 = arith.constant 0 : index
    %c0_10 = arith.constant 0 : index
    %14 = memref.load %arg5[%c0_9, %c0_10] : memref<1x1xf32, #tpu.memory_space<smem>>
    %15 = vector.broadcast %14 : f32 to vector<1x128xf32>
    %16 = arith.addf %13, %15 : vector<1x128xf32>
    %17 = arith.negf %16 : vector<1x128xf32>
    %18 = math.exp %17 : vector<1x128xf32>
    %cst_11 = arith.constant 1.000000e+00 : f32
    %19 = vector.broadcast %cst_11 : f32 to vector<1x128xf32>
    %20 = arith.addf %19, %18 : vector<1x128xf32>
    %21 = arith.divf %19, %20 : vector<1x128xf32>
    %22 = vector.extract_strided_slice %5 {offsets = [128, 0], sizes = [16, 128], strides = [1, 1]} : vector<144x128xf32> to vector<16x128xf32>
    %23 = tpu.concatenate %22, %21 in 0 : vector<16x128xf32>, vector<1x128xf32> -> vector<17x128xf32>
    %c0_12 = arith.constant 0 : index
    %c0_13 = arith.constant 0 : index
    %24 = vector.load %arg6[%c0_12, %c0_13] : memref<17x128xf32, #tpu.memory_space<vmem>>, vector<17x128xf32>
    tpu.vector_store %arg6[%c0_12, %c0_13], %23 {strides = array<i32>} : memref<17x128xf32, #tpu.memory_space<vmem>>, vector<17x128xf32>,
    return
  }
  func.func @transform_0(%arg0: i32) -> (i32, i32) {
    %c0_i32 = arith.constant 0 : i32
    %c0_i32_0 = arith.constant 0 : i32
    return %arg0, %c0_i32 : i32, i32
  }
  func.func @transform_1(%arg0: i32) -> (i32, i32) {
    %c0_i32 = arith.constant 0 : i32
    %c0_i32_0 = arith.constant 0 : i32
    %c0_i32_1 = arith.constant 0 : i32
    return %c0_i32, %c0_i32_0 : i32, i32
  }
  func.func @transform_2(%arg0: i32) -> (i32, i32) {
    %c0_i32 = arith.constant 0 : i32
    %c0_i32_0 = arith.constant 0 : i32
    %c0_i32_1 = arith.constant 0 : i32
    return %c0_i32, %c0_i32_0 : i32, i32
  }
  func.func @transform_3(%arg0: i32) -> (i32, i32) {
    %c0_i32 = arith.constant 0 : i32
    %c0_i32_0 = arith.constant 0 : i32
    %c0_i32_1 = arith.constant 0 : i32
    return %c0_i32, %c0_i32_0 : i32, i32
  }
  func.func @transform_4(%arg0: i32) -> (i32, i32) {
    %c0_i32 = arith.constant 0 : i32
    %c0_i32_0 = arith.constant 0 : i32
    %c0_i32_1 = arith.constant 0 : i32
    return %c0_i32, %c0_i32_0 : i32, i32
  }
  func.func @transform_5(%arg0: i32) -> (i32, i32) {
    %c0_i32 = arith.constant 0 : i32
    %c0_i32_0 = arith.constant 0 : i32
    return %c0_i32, %arg0 : i32, i32
  }
}

</mosaic_0001>

<llo_original>
// kernel: gated_attention_forward.1
$region0: #{gated_attention_forward.1}
  #allocation0 [shape = 'u32[]', space=smem, size = 0x4, offset = 0x4, fixed_abs, tag = 'smem constant byte address 0x4 - core index']
  #allocation1 [shape = 'u32[144,128]{1,0:T(1,128)}', space=vmem, size = 0x12000, scoped, tag = 'internal scratch']
  #allocation2 [shape = 'f32[1,1]{1,0:T(1,128)S(6)}', space=smem, size = 0x200, scoped, tag = 'scoped memory for gated_attention_forward.1']
  %s0 = inlined_call_operand.vmem [shape: f32[256,128], index: 0, kind: input, shape index: {}]
  %s1 = inlined_call_operand.vmem [shape: f32[144,128], index: 1, kind: input, shape index: {}]
  %s2 = inlined_call_operand.vmem [shape: f32[144,1], index: 2, kind: input, shape index: {}]
  %s3 = inlined_call_operand.vmem [shape: f32[128,1], index: 3, kind: input, shape index: {}]
  %s4 = inlined_call_operand.<no memory space> [shape: f32[1,1], index: 4, kind: input, shape index: {}]
  %s5 = inlined_call_operand.vmem [shape: f32[17,256], index: 5, kind: output, shape index: {}]
  %s6 = sld [smem:[#allocation0]]
  $region87: #{gated_attention_forward.1} parent=0
    _
  %s8 = ssub.s32 1, %s6
  %s9 = scalar_select 0, %s8, %s6
  %10 = sst [smem:[#allocation2]] %s4
  $region1: #{gated_attention_forward.1} parent=0
    #allocation3 [shape = 'u8[24576]{0}', space=vmem, size = 0x6000, scoped, tag = 'output window, operand 0']
    loop: start=0, step=1, limit=4
    $region2: #{gated_attention_forward.1} parent=1 // loop_pre_header
      _
    $region3: #{gated_attention_forward.1} parent=1 // loop_header
      %s12 = sphi 0, %s16
      %p13 = scmp.ge.s32.totalorder %s12, 4
      %s22 = sphi 0, %s24
      %s25 = sphi 0, %s22
      %s26 = sphi 0, %s25
      %s42 = sphi 0, %s26
      %s46 = sphi 0, %s46
      %s48 = sphi 0, %s46
      %s49 = sphi 0, %s48
      %s63 = sphi 0, %s49
      %s67 = sphi 0, %s67
      %s69 = sphi 0, %s67
      %s70 = sphi 0, %s69
      %s84 = sphi 0, %s70
      %s88 = sphi 0, %s88
      %s90 = sphi 0, %s88
      %s91 = sphi 0, %s90
      %s105 = sphi 0, %s91
      %s109 = sphi 0, %s109
      %s111 = sphi 0, %s109
      %s112 = sphi 0, %s111
      %s126 = sphi 0, %s112
      %s132 = sphi 0, %s134
      %s135 = sphi 0, %s132
      %s136 = sphi 0, %s135
      %s152 = sphi 0, %s136
    $region4: #{gated_attention_forward.1} parent=1 // loop_header_branch
      %15 = sbr.rel (%p13) target = $region8
    $region5: #{gated_attention_forward.1} parent=1 // loop_body
      %s17 = ssub.s32 %s12, 1
      %s18 = ssub.s32 %s12, 2
      %s19 = sadd.s32 %s12, 1
      %s20 = ssub.s32 %s12, %s19
      %p21 = scmp.eq.s32.totalorder %s20, 0
      %s23 = sadd.s32 %s22, 1
      %s24 = scalar_select %p21, %s22, %s23
      %p27 = pneg %p21
      %p28 = scmp.eq.s32.totalorder %s12, 1
      %p29 = por %p27, %p28
      %p30 = scmp.ne.s32.totalorder %s22, %s25
      %p31 = scmp.eq.s32.totalorder %s12, 0
      %p32 = por %p30, %p31
      %p33 = scmp.ne.s32.totalorder %s22, %s25
      %p34 = scmp.eq.s32.totalorder %s17, 1
      %p35 = por %p33, %p34
      %p36 = scmp.ne.s32.totalorder %s25, %s26
      %p37 = scmp.eq.s32.totalorder %s17, 0
      %p38 = por %p36, %p37
      %p39 = scmp.ne.s32.totalorder %s25, %s26
      %p40 = scmp.eq.s32.totalorder %s18, 1
      %p41 = por %p39, %p40
      %p43 = scmp.ne.s32.totalorder %s26, %s42
      %p44 = scmp.eq.s32.totalorder %s18, 0
      %p45 = por %p43, %p44
      %s47 = sadd.s32 %s46, 1
      %p50 = scmp.eq.s32.totalorder %s12, 1
      %p51 = scmp.ne.s32.totalorder %s46, %s48
      %p52 = scmp.eq.s32.totalorder %s12, 0
      %p53 = por %p51, %p52
      %p54 = scmp.ne.s32.totalorder %s46, %s48
      %p55 = scmp.eq.s32.totalorder %s17, 1
      %p56 = por %p54, %p55
      %p57 = scmp.ne.s32.totalorder %s48, %s49
      %p58 = scmp.eq.s32.totalorder %s17, 0
      %p59 = por %p57, %p58
      %p60 = scmp.ne.s32.totalorder %s48, %s49
      %p61 = scmp.eq.s32.totalorder %s18, 1
      %p62 = por %p60, %p61
      %p64 = scmp.ne.s32.totalorder %s49, %s63
      %p65 = scmp.eq.s32.totalorder %s18, 0
      %p66 = por %p64, %p65
      %s68 = sadd.s32 %s67, 1
      %p71 = scmp.eq.s32.totalorder %s12, 1
      %p72 = scmp.ne.s32.totalorder %s67, %s69
      %p73 = scmp.eq.s32.totalorder %s12, 0
      %p74 = por %p72, %p73
      %p75 = scmp.ne.s32.totalorder %s67, %s69
      %p76 = scmp.eq.s32.totalorder %s17, 1
      %p77 = por %p75, %p76
      %p78 = scmp.ne.s32.totalorder %s69, %s70
      %p79 = scmp.eq.s32.totalorder %s17, 0
      %p80 = por %p78, %p79
      %p81 = scmp.ne.s32.totalorder %s69, %s70
      %p82 = scmp.eq.s32.totalorder %s18, 1
      %p83 = por %p81, %p82
      %p85 = scmp.ne.s32.totalorder %s70, %s84
      %p86 = scmp.eq.s32.totalorder %s18, 0
      %p87 = por %p85, %p86
      %s89 = sadd.s32 %s88, 1
      %p92 = scmp.eq.s32.totalorder %s12, 1
      %p93 = scmp.ne.s32.totalorder %s88, %s90
      %p94 = scmp.eq.s32.totalorder %s12, 0
      %p95 = por %p93, %p94
      %p96 = scmp.ne.s32.totalorder %s88, %s90
      %p97 = scmp.eq.s32.totalorder %s17, 1
      %p98 = por %p96, %p97
      %p99 = scmp.ne.s32.totalorder %s90, %s91
      %p100 = scmp.eq.s32.totalorder %s17, 0
      %p101 = por %p99, %p100
      %p102 = scmp.ne.s32.totalorder %s90, %s91
      %p103 = scmp.eq.s32.totalorder %s18, 1
      %p104 = por %p102, %p103
      %p106 = scmp.ne.s32.totalorder %s91, %s105
      %p107 = scmp.eq.s32.totalorder %s18, 0
      %p108 = por %p106, %p107
      %s110 = sadd.s32 %s109, 1
      %p113 = scmp.eq.s32.totalorder %s12, 1
      %p114 = scmp.ne.s32.totalorder %s109, %s111
      %p115 = scmp.eq.s32.totalorder %s12, 0
      %p116 = por %p114, %p115
      %p117 = scmp.ne.s32.totalorder %s109, %s111
      %p118 = scmp.eq.s32.totalorder %s17, 1
      %p119 = por %p117, %p118
      %p120 = scmp.ne.s32.totalorder %s111, %s112
      %p121 = scmp.eq.s32.totalorder %s17, 0
      %p122 = por %p120, %p121
      %p123 = scmp.ne.s32.totalorder %s111, %s112
      %p124 = scmp.eq.s32.totalorder %s18, 1
      %p125 = por %p123, %p124
      %p127 = scmp.ne.s32.totalorder %s112, %s126
      %p128 = scmp.eq.s32.totalorder %s18, 0
      %p129 = por %p127, %p128
      %s130 = ssub.s32 %s12, %s19
      %p131 = scmp.eq.s32.totalorder %s130, 0
      %s133 = sadd.s32 %s132, 1
      %s134 = scalar_select %p131, %s132, %s133
      %p137 = pneg %p131
      %p138 = scmp.eq.s32.totalorder %s12, 1
      %p139 = por %p137, %p138
      %p140 = scmp.ne.s32.totalorder %s132, %s135
      %p141 = scmp.eq.s32.totalorder %s12, 0
      %p142 = por %p140, %p141
      %p143 = scmp.ne.s32.totalorder %s132, %s135
      %p144 = scmp.eq.s32.totalorder %s17, 1
      %p145 = por %p143, %p144
      %p146 = scmp.ne.s32.totalorder %s135, %s136
      %p147 = scmp.eq.s32.totalorder %s17, 0
      %p148 = por %p146, %p147
      %p149 = scmp.ne.s32.totalorder %s135, %s136
      %p150 = scmp.eq.s32.totalorder %s18, 1
      %p151 = por %p149, %p150
      %p153 = scmp.ne.s32.totalorder %s136, %s152
      %p154 = scmp.eq.s32.totalorder %s18, 0
      %p155 = por %p153, %p154
      %p156 = scmp.le.s32.totalorder 1, %s12
      %p157 = scmp.lt.s32.totalorder %s12, 3
      %p158 = pnand %p156, %p157
      %p159 = pneg %p158
      // Predicated region
      $region9: #{gated_attention_forward.1} parent=5 // pred_check
        _
      $region10: #{gated_attention_forward.1} parent=5 // pred_check_branch
        %161 = sbr.rel (%p158) target = $region12
      $region11: #{gated_attention_forward.1} parent=5 // pred_region
        %s162 = ssub.s32 %s12, 1
        // Predicated region
        $region13: #{gated_attention_forward.1} parent=11 // pred_check
          %p163 = pneg %p59
        $region14: #{gated_attention_forward.1} parent=11 // pred_check_branch
          %165 = sbr.rel (%p163) target = $region16
        $region15: #{gated_attention_forward.1} parent=11 // pred_region
          _
        $region16: #{gated_attention_forward.1} parent=11 // pred_fallthru
          _
        // Predicated region
        $region17: #{gated_attention_forward.1} parent=11 // pred_check
          %p166 = pneg %p80
        $region18: #{gated_attention_forward.1} parent=11 // pred_check_branch
          %168 = sbr.rel (%p166) target = $region20
        $region19: #{gated_attention_forward.1} parent=11 // pred_region
          _
        $region20: #{gated_attention_forward.1} parent=11 // pred_fallthru
          _
        // Predicated region
        $region21: #{gated_attention_forward.1} parent=11 // pred_check
          %p169 = pneg %p101
        $region22: #{gated_attention_forward.1} parent=11 // pred_check_branch
          %171 = sbr.rel (%p169) target = $region24
        $region23: #{gated_attention_forward.1} parent=11 // pred_region
          _
        $region24: #{gated_attention_forward.1} parent=11 // pred_fallthru
          _
        // Predicated region
        $region25: #{gated_attention_forward.1} parent=11 // pred_check
          %p172 = pneg %p122
        $region26: #{gated_attention_forward.1} parent=11 // pred_check_branch
          %174 = sbr.rel (%p172) target = $region28
        $region27: #{gated_attention_forward.1} parent=11 // pred_region
          _
        $region28: #{gated_attention_forward.1} parent=11 // pred_fallthru
          _
      $region12: #{gated_attention_forward.1} parent=5 // pred_fallthru
        _
      %p175 = scmp.lt.s32.totalorder %s12, 2
      // Predicated region
      $region29: #{gated_attention_forward.1} parent=5 // pred_check
        %p176 = pneg %p175
      $region30: #{gated_attention_forward.1} parent=5 // pred_check_branch
        %178 = sbr.rel (%p176) target = $region32
      $region31: #{gated_attention_forward.1} parent=5 // pred_region
        // Predicated region
        $region33: #{gated_attention_forward.1} parent=31 // pred_check
          %p179 = pneg %p32
        $region34: #{gated_attention_forward.1} parent=31 // pred_check_branch
          %181 = sbr.rel (%p179) target = $region36
        $region35: #{gated_attention_forward.1} parent=31 // pred_region
          %s182 = smul.u32 16, %s12
          %p183 = scmp.lt.s32.totalorder %s182, 31
          %s184 = scalar_select %p183, %s182, 31
          %s185 = smul.addr %s184, 8
          %s186 = scalar_lea.vmem %s0, %s185
          %s187 = smul.u32 16, %s12
        $region36: #{gated_attention_forward.1} parent=31 // pred_fallthru
          _
      $region32: #{gated_attention_forward.1} parent=5 // pred_fallthru
        _
      %p188 = scmp.le.s32.totalorder 1, %s12
      %p189 = scmp.lt.s32.totalorder %s12, 3
      %p190 = pnand %p188, %p189
      %p191 = pneg %p190
      // Predicated region
      $region37: #{gated_attention_forward.1} parent=5 // pred_check
        _
      $region38: #{gated_attention_forward.1} parent=5 // pred_check_branch
        %193 = sbr.rel (%p190) target = $region40
      $region39: #{gated_attention_forward.1} parent=5 // pred_region
        %s194 = ssub.s32 %s12, 1
        %s195 = smul.u32 16, %s17
        %p196 = scmp.lt.s32.totalorder %s195, 31
        %s197 = scalar_select %p196, %s195, 31
        %s198 = smul.addr %s197, 8
        %s199 = scalar_lea.vmem %s0, %s198
        %p200 = pneg %p38
        %p201 = pneg %p35
        %p202 = pneg %p59
        %p203 = pneg %p56
        %p204 = pneg %p80
        %p205 = pneg %p77
        %p206 = pneg %p101
        %p207 = pneg %p98
        %p208 = pneg %p122
        %p209 = pneg %p119
        %p210 = pneg %p148
        %p211 = pneg %p145
        %s212 = sand.u32 %s135, 1
        %s213 = sand.u32 %s135, 1
        %s214 = smul.addr %s213, 24
        %s215 = scalar_lea.vmem [#allocation3], %s214
        %s216 = smul.u32 16, %s17
        %p217 = scmp.lt.s32.totalorder %s216, 31
        %s218 = scalar_select %p217, %s216, 31
        %s219 = smul.addr %s218, 8
        %s220 = scalar_lea.vmem %s0, %s219
        %s221 = smul.u32 16, %s17
        %v222 = vld [vmem:[%s1] sm:$0xff]
        %v223 = vld [vmem:[%s1 + $0x8] sm:$0xff]
        %v224 = vld [vmem:[%s1 + $0x10] sm:$0xff]
        %v225 = vld [vmem:[%s1 + $0x18] sm:$0xff]
        %v226 = vld [vmem:[%s1 + $0x20] sm:$0xff]
        %v227 = vld [vmem:[%s1 + $0x28] sm:$0xff]
        %v228 = vld [vmem:[%s1 + $0x30] sm:$0xff]
        %v229 = vld [vmem:[%s1 + $0x38] sm:$0xff]
        %v230 = vld [vmem:[%s1 + $0x40] sm:$0xff]
        %v231 = vld [vmem:[%s1 + $0x48] sm:$0xff]
        %v232 = vld [vmem:[%s1 + $0x50] sm:$0xff]
        %v233 = vld [vmem:[%s1 + $0x58] sm:$0xff]
        %v234 = vld [vmem:[%s1 + $0x60] sm:$0xff]
        %v235 = vld [vmem:[%s1 + $0x68] sm:$0xff]
        %v236 = vld [vmem:[%s1 + $0x70] sm:$0xff]
        %v237 = vld [vmem:[%s1 + $0x78] sm:$0xff]
        %v238 = vld [vmem:[%s1 + $0x80] sm:$0xff]
        %v239 = vld [vmem:[%s1 + $0x88] sm:$0xff]
        %v240 = vld [vmem:[%s220] sm:$0xff]
        %v241 = vld [vmem:[%s220 + $0x8] sm:$0xff]
        %v242 = vld [vmem:[%s220 + $0x10] sm:$0xff]
        %v243 = vld [vmem:[%s220 + $0x18] sm:$0xff]
        %v244 = vld [vmem:[%s220 + $0x20] sm:$0xff]
        %v245 = vld [vmem:[%s220 + $0x28] sm:$0xff]
        %v246 = vld [vmem:[%s220 + $0x30] sm:$0xff]
        %v247 = vld [vmem:[%s220 + $0x38] sm:$0xff]
        %v248 = vld [vmem:[%s220 + $0x40] sm:$0xff]
        %v249 = vld [vmem:[%s220 + $0x48] sm:$0xff]
        %v250 = vld [vmem:[%s220 + $0x50] sm:$0xff]
        %v251 = vld [vmem:[%s220 + $0x58] sm:$0xff]
        %v252 = vld [vmem:[%s220 + $0x60] sm:$0xff]
        %v253 = vld [vmem:[%s220 + $0x68] sm:$0xff]
        %v254 = vld [vmem:[%s220 + $0x70] sm:$0xff]
        %v255 = vld [vmem:[%s220 + $0x78] sm:$0xff]
        %v256 = vld [vmem:[%s2] sm:$0xff]
        %v257 = vld [vmem:[%s2 + $0x8] sm:$0xff]
        %v258 = vld [vmem:[%s2 + $0x10] sm:$0xff]
        %v259 = vld [vmem:[%s2 + $0x18] sm:$0xff]
        %v260 = vld [vmem:[%s2 + $0x20] sm:$0xff]
        %v261 = vld [vmem:[%s2 + $0x28] sm:$0xff]
        %v262 = vld [vmem:[%s2 + $0x30] sm:$0xff]
        %v263 = vld [vmem:[%s2 + $0x38] sm:$0xff]
        %v264 = vld [vmem:[%s2 + $0x40] sm:$0xff]
        %v265 = vld [vmem:[%s2 + $0x48] sm:$0xff]
        %v266 = vld [vmem:[%s2 + $0x50] sm:$0xff]
        %v267 = vld [vmem:[%s2 + $0x58] sm:$0xff]
        %v268 = vld [vmem:[%s2 + $0x60] sm:$0xff]
        %v269 = vld [vmem:[%s2 + $0x68] sm:$0xff]
        %v270 = vld [vmem:[%s2 + $0x70] sm:$0xff]
        %v271 = vld [vmem:[%s2 + $0x78] sm:$0xff]
        %v272 = vld [vmem:[%s2 + $0x80] sm:$0xff]
        %v273 = vld [vmem:[%s2 + $0x88] sm:$0xff]
        %275 = vset.pattern.permute.xlu0 0
        %276 = vperm.xlu0 %275, %v256
        %v277 = vpop.permute.xlu0 %276
        %280 = vset.pattern.permute.xlu0 0
        %281 = vperm.xlu0 %280, %v257
        %v282 = vpop.permute.xlu0 %281
        %285 = vset.pattern.permute.xlu0 0
        %286 = vperm.xlu0 %285, %v258
        %v287 = vpop.permute.xlu0 %286
        %290 = vset.pattern.permute.xlu0 0
        %291 = vperm.xlu0 %290, %v259
        %v292 = vpop.permute.xlu0 %291
        %295 = vset.pattern.permute.xlu0 0
        %296 = vperm.xlu0 %295, %v260
        %v297 = vpop.permute.xlu0 %296
        %300 = vset.pattern.permute.xlu0 0
        %301 = vperm.xlu0 %300, %v261
        %v302 = vpop.permute.xlu0 %301
        %305 = vset.pattern.permute.xlu0 0
        %306 = vperm.xlu0 %305, %v262
        %v307 = vpop.permute.xlu0 %306
        %310 = vset.pattern.permute.xlu0 0
        %311 = vperm.xlu0 %310, %v263
        %v312 = vpop.permute.xlu0 %311
        %315 = vset.pattern.permute.xlu0 0
        %316 = vperm.xlu0 %315, %v264
        %v317 = vpop.permute.xlu0 %316
        %320 = vset.pattern.permute.xlu0 0
        %321 = vperm.xlu0 %320, %v265
        %v322 = vpop.permute.xlu0 %321
        %325 = vset.pattern.permute.xlu0 0
        %326 = vperm.xlu0 %325, %v266
        %v327 = vpop.permute.xlu0 %326
        %330 = vset.pattern.permute.xlu0 0
        %331 = vperm.xlu0 %330, %v267
        %v332 = vpop.permute.xlu0 %331
        %335 = vset.pattern.permute.xlu0 0
        %336 = vperm.xlu0 %335, %v268
        %v337 = vpop.permute.xlu0 %336
        %340 = vset.pattern.permute.xlu0 0
        %341 = vperm.xlu0 %340, %v269
        %v342 = vpop.permute.xlu0 %341
        %345 = vset.pattern.permute.xlu0 0
        %346 = vperm.xlu0 %345, %v270
        %v347 = vpop.permute.xlu0 %346
        %350 = vset.pattern.permute.xlu0 0
        %351 = vperm.xlu0 %350, %v271
        %v352 = vpop.permute.xlu0 %351
        %355 = vset.pattern.permute.xlu0 0
        %356 = vperm.xlu0 %355, %v272
        %v357 = vpop.permute.xlu0 %356
        %360 = vset.pattern.permute.xlu0 0
        %361 = vperm.xlu0 %360, %v273
        %v362 = vpop.permute.xlu0 %361
        %364 = vmatprep.subr.mxu0 0.0
        %365 = vmatpush1.xpose.msra.mxu0 %v255
        %366 = vmatprep.subr.mxu0 0.0
        %367 = vmatpush1.xpose.msra.mxu0 %v254
        %368 = vmatprep.subr.mxu0 0.0
        %369 = vmatpush1.xpose.msra.mxu0 %v253
        %370 = vmatprep.subr.mxu0 0.0
        %371 = vmatpush1.xpose.msra.mxu0 %v252
        %372 = vmatprep.subr.mxu0 0.0
        %373 = vmatpush1.xpose.msra.mxu0 %v251
        %374 = vmatprep.subr.mxu0 0.0
        %375 = vmatpush1.xpose.msra.mxu0 %v250
        %376 = vmatprep.subr.mxu0 0.0
        %377 = vmatpush1.xpose.msra.mxu0 %v249
        %378 = vmatprep.subr.mxu0 0.0
        %379 = vmatpush1.xpose.msra.mxu0 %v248
        %380 = vmatprep.subr.mxu0 0.0
        %381 = vmatpush1.xpose.msra.mxu0 %v247
        %382 = vmatprep.subr.mxu0 0.0
        %383 = vmatpush1.xpose.msra.mxu0 %v246
        %384 = vmatprep.subr.mxu0 0.0
        %385 = vmatpush1.xpose.msra.mxu0 %v245
        %386 = vmatprep.subr.mxu0 0.0
        %387 = vmatpush1.xpose.msra.mxu0 %v244
        %388 = vmatprep.subr.mxu0 0.0
        %389 = vmatpush1.xpose.msra.mxu0 %v243
        %390 = vmatprep.subr.mxu0 0.0
        %391 = vmatpush1.xpose.msra.mxu0 %v242
        %392 = vmatprep.subr.mxu0 0.0
        %393 = vmatpush1.xpose.msra.mxu0 %v241
        %394 = vmatprep.subr.mxu0 0.0
        %395 = vmatpush1.xpose.msra.mxu0 %v240
        %396 = vmatprep.subr.mxu0 0.0
        %397 = vmatpush2.xpose.msra.mxu0 0.0
        %398 = vmatprep.subr.mxu0 0.0
        %399 = vmatpush2.xpose.msra.mxu0 0.0
        %400 = vmatprep.subr.mxu0 0.0
        %401 = vmatpush2.xpose.msra.mxu0 0.0
        %402 = vmatprep.subr.mxu0 0.0
        %403 = vmatpush2.xpose.msra.mxu0 0.0
        %404 = vmatprep.subr.mxu0 0.0
        %405 = vmatpush2.xpose.msra.mxu0 0.0
        %406 = vmatprep.subr.mxu0 0.0
        %407 = vmatpush2.xpose.msra.mxu0 0.0
        %408 = vmatprep.subr.mxu0 0.0
        %409 = vmatpush2.xpose.msra.mxu0 0.0
        %410 = vmatprep.subr.mxu0 0.0
        %411 = vmatpush2.xpose.msra.mxu0 0.0
        %412 = vmatprep.subr.mxu0 0.0
        %413 = vmatpush2.xpose.msra.mxu0 0.0
        %414 = vmatprep.subr.mxu0 0.0
        %415 = vmatpush2.xpose.msra.mxu0 0.0
        %416 = vmatprep.subr.mxu0 0.0
        %417 = vmatpush2.xpose.msra.mxu0 0.0
        %418 = vmatprep.subr.mxu0 0.0
        %419 = vmatpush2.xpose.msra.mxu0 0.0
        %420 = vmatprep.subr.mxu0 0.0
        %421 = vmatpush2.xpose.msra.mxu0 0.0
        %422 = vmatprep.subr.mxu0 0.0
        %423 = vmatpush2.xpose.msra.mxu0 0.0
        %424 = vmatprep.subr.mxu0 0.0
        %425 = vmatpush2.xpose.msra.mxu0 0.0
        %426 = vmatprep.subr.mxu0 0.0
        %427 = vmatpush2.xpose.msra.mxu0 0.0
        %428 = vmatprep.mubr.f32.mxu0 0.0
        %429 = vmatmul.mubr.f32.gmra.mxu0 %v222
        %v430 = vpop.f32.mrf.mxu0
        %v431 = vadd.f32 %v277, %v430
        %v432 = vpop.f32.mrf.mxu0
        %433 = vmatprep.mubr.f32.mxu0 0.0
        %434 = vmatmul.mubr.f32.gmra.mxu0 %v223
        %v435 = vpop.f32.mrf.mxu0
        %v436 = vadd.f32 %v282, %v435
        %v437 = vpop.f32.mrf.mxu0
        %438 = vmatprep.mubr.f32.mxu0 0.0
        %439 = vmatmul.mubr.f32.gmra.mxu0 %v224
        %v440 = vpop.f32.mrf.mxu0
        %v441 = vadd.f32 %v287, %v440
        %v442 = vpop.f32.mrf.mxu0
        %443 = vmatprep.mubr.f32.mxu0 0.0
        %444 = vmatmul.mubr.f32.gmra.mxu0 %v225
        %v445 = vpop.f32.mrf.mxu0
        %v446 = vadd.f32 %v292, %v445
        %v447 = vpop.f32.mrf.mxu0
        %448 = vmatprep.mubr.f32.mxu0 0.0
        %449 = vmatmul.mubr.f32.gmra.mxu0 %v226
        %v450 = vpop.f32.mrf.mxu0
        %v451 = vadd.f32 %v297, %v450
        %v452 = vpop.f32.mrf.mxu0
        %453 = vmatprep.mubr.f32.mxu0 0.0
        %454 = vmatmul.mubr.f32.gmra.mxu0 %v227
        %v455 = vpop.f32.mrf.mxu0
        %v456 = vadd.f32 %v302, %v455
        %v457 = vpop.f32.mrf.mxu0
        %458 = vmatprep.mubr.f32.mxu0 0.0
        %459 = vmatmul.mubr.f32.gmra.mxu0 %v228
        %v460 = vpop.f32.mrf.mxu0
        %v461 = vadd.f32 %v307, %v460
        %v462 = vpop.f32.mrf.mxu0
        %463 = vmatprep.mubr.f32.mxu0 0.0
        %464 = vmatmul.mubr.f32.gmra.mxu0 %v229
        %v465 = vpop.f32.mrf.mxu0
        %v466 = vadd.f32 %v312, %v465
        %v467 = vpop.f32.mrf.mxu0
        %468 = vmatprep.mubr.f32.mxu0 0.0
        %469 = vmatmul.mubr.f32.gmra.mxu0 %v230
        %v470 = vpop.f32.mrf.mxu0
        %v471 = vadd.f32 %v317, %v470
        %v472 = vpop.f32.mrf.mxu0
        %473 = vmatprep.mubr.f32.mxu0 0.0
        %474 = vmatmul.mubr.f32.gmra.mxu0 %v231
        %v475 = vpop.f32.mrf.mxu0
        %v476 = vadd.f32 %v322, %v475
        %v477 = vpop.f32.mrf.mxu0
        %478 = vmatprep.mubr.f32.mxu0 0.0
        %479 = vmatmul.mubr.f32.gmra.mxu0 %v232
        %v480 = vpop.f32.mrf.mxu0
        %v481 = vadd.f32 %v327, %v480
        %v482 = vpop.f32.mrf.mxu0
        %483 = vmatprep.mubr.f32.mxu0 0.0
        %484 = vmatmul.mubr.f32.gmra.mxu0 %v233
        %v485 = vpop.f32.mrf.mxu0
        %v486 = vadd.f32 %v332, %v485
        %v487 = vpop.f32.mrf.mxu0
        %488 = vmatprep.mubr.f32.mxu0 0.0
        %489 = vmatmul.mubr.f32.gmra.mxu0 %v234
        %v490 = vpop.f32.mrf.mxu0
        %v491 = vadd.f32 %v337, %v490
        %v492 = vpop.f32.mrf.mxu0
        %493 = vmatprep.mubr.f32.mxu0 0.0
        %494 = vmatmul.mubr.f32.gmra.mxu0 %v235
        %v495 = vpop.f32.mrf.mxu0
        %v496 = vadd.f32 %v342, %v495
        %v497 = vpop.f32.mrf.mxu0
        %498 = vmatprep.mubr.f32.mxu0 0.0
        %499 = vmatmul.mubr.f32.gmra.mxu0 %v236
        %v500 = vpop.f32.mrf.mxu0
        %v501 = vadd.f32 %v347, %v500
        %v502 = vpop.f32.mrf.mxu0
        %503 = vmatprep.mubr.f32.mxu0 0.0
        %504 = vmatmul.mubr.f32.gmra.mxu0 %v237
        %v505 = vpop.f32.mrf.mxu0
        %v506 = vadd.f32 %v352, %v505
        %v507 = vpop.f32.mrf.mxu0
        %508 = vmatprep.mubr.f32.mxu0 0.0
        %509 = vmatmul.mubr.f32.gmra.mxu0 %v238
        %v510 = vpop.f32.mrf.mxu0
        %v511 = vadd.f32 %v357, %v510
        %v512 = vpop.f32.mrf.mxu0
        %513 = vmatprep.mubr.f32.mxu0 0.0
        %514 = vmatmul.mubr.f32.gmra.mxu0 %v239
        %v515 = vpop.f32.mrf.mxu0
        %v516 = vadd.f32 %v362, %v515
        %v517 = vpop.f32.mrf.mxu0
        %518 = vdwg.mxu0
        %v519 = vmax.f32 %v431, 0.0
        %v520 = vmax.f32 %v436, 0.0
        %v521 = vmax.f32 %v441, 0.0
        %v522 = vmax.f32 %v446, 0.0
        %v523 = vmax.f32 %v451, 0.0
        %v524 = vmax.f32 %v456, 0.0
        %v525 = vmax.f32 %v461, 0.0
        %v526 = vmax.f32 %v466, 0.0
        %v527 = vmax.f32 %v471, 0.0
        %v528 = vmax.f32 %v476, 0.0
        %v529 = vmax.f32 %v481, 0.0
        %v530 = vmax.f32 %v486, 0.0
        %v531 = vmax.f32 %v491, 0.0
        %v532 = vmax.f32 %v496, 0.0
        %v533 = vmax.f32 %v501, 0.0
        %v534 = vmax.f32 %v506, 0.0
        %v535 = vld [vmem:[%s3] sm:$0xff]
        %v536 = vld [vmem:[%s3 + $0x8] sm:$0xff]
        %v537 = vld [vmem:[%s3 + $0x10] sm:$0xff]
        %v538 = vld [vmem:[%s3 + $0x18] sm:$0xff]
        %v539 = vld [vmem:[%s3 + $0x20] sm:$0xff]
        %v540 = vld [vmem:[%s3 + $0x28] sm:$0xff]
        %v541 = vld [vmem:[%s3 + $0x30] sm:$0xff]
        %v542 = vld [vmem:[%s3 + $0x38] sm:$0xff]
        %v543 = vld [vmem:[%s3 + $0x40] sm:$0xff]
        %v544 = vld [vmem:[%s3 + $0x48] sm:$0xff]
        %v545 = vld [vmem:[%s3 + $0x50] sm:$0xff]
        %v546 = vld [vmem:[%s3 + $0x58] sm:$0xff]
        %v547 = vld [vmem:[%s3 + $0x60] sm:$0xff]
        %v548 = vld [vmem:[%s3 + $0x68] sm:$0xff]
        %v549 = vld [vmem:[%s3 + $0x70] sm:$0xff]
        %v550 = vld [vmem:[%s3 + $0x78] sm:$0xff]
        %552 = vset.pattern.permute.xlu0 0
        %553 = vperm.xlu0 %552, %v535
        %v554 = vpop.permute.xlu0 %553
        %557 = vset.pattern.permute.xlu0 0
        %558 = vperm.xlu0 %557, %v536
        %v559 = vpop.permute.xlu0 %558
        %562 = vset.pattern.permute.xlu0 0
        %563 = vperm.xlu0 %562, %v537
        %v564 = vpop.permute.xlu0 %563
        %567 = vset.pattern.permute.xlu0 0
        %568 = vperm.xlu0 %567, %v538
        %v569 = vpop.permute.xlu0 %568
        %572 = vset.pattern.permute.xlu0 0
        %573 = vperm.xlu0 %572, %v539
        %v574 = vpop.permute.xlu0 %573
        %577 = vset.pattern.permute.xlu0 0
        %578 = vperm.xlu0 %577, %v540
        %v579 = vpop.permute.xlu0 %578
        %582 = vset.pattern.permute.xlu0 0
        %583 = vperm.xlu0 %582, %v541
        %v584 = vpop.permute.xlu0 %583
        %587 = vset.pattern.permute.xlu0 0
        %588 = vperm.xlu0 %587, %v542
        %v589 = vpop.permute.xlu0 %588
        %592 = vset.pattern.permute.xlu0 0
        %593 = vperm.xlu0 %592, %v543
        %v594 = vpop.permute.xlu0 %593
        %597 = vset.pattern.permute.xlu0 0
        %598 = vperm.xlu0 %597, %v544
        %v599 = vpop.permute.xlu0 %598
        %602 = vset.pattern.permute.xlu0 0
        %603 = vperm.xlu0 %602, %v545
        %v604 = vpop.permute.xlu0 %603
        %607 = vset.pattern.permute.xlu0 0
        %608 = vperm.xlu0 %607, %v546
        %v609 = vpop.permute.xlu0 %608
        %612 = vset.pattern.permute.xlu0 0
        %613 = vperm.xlu0 %612, %v547
        %v614 = vpop.permute.xlu0 %613
        %617 = vset.pattern.permute.xlu0 0
        %618 = vperm.xlu0 %617, %v548
        %v619 = vpop.permute.xlu0 %618
        %622 = vset.pattern.permute.xlu0 0
        %623 = vperm.xlu0 %622, %v549
        %v624 = vpop.permute.xlu0 %623
        %627 = vset.pattern.permute.xlu0 0
        %628 = vperm.xlu0 %627, %v550
        %v629 = vpop.permute.xlu0 %628
        %v631 = vmul.f32 %v519, %v554
        %v632 = vmul.f32 %v520, %v559
        %v633 = vmul.f32 %v521, %v564
        %v634 = vmul.f32 %v522, %v569
        %v635 = vmul.f32 %v523, %v574
        %v636 = vmul.f32 %v524, %v579
        %v637 = vmul.f32 %v525, %v584
        %v638 = vmul.f32 %v526, %v589
        %v639 = vmul.f32 %v527, %v594
        %v640 = vmul.f32 %v528, %v599
        %v641 = vmul.f32 %v529, %v604
        %v642 = vmul.f32 %v530, %v609
        %v643 = vmul.f32 %v531, %v614
        %v644 = vmul.f32 %v532, %v619
        %v645 = vmul.f32 %v533, %v624
        %v646 = vmul.f32 %v534, %v629
        %v647 = vadd.f32 %v631, %v632
        %v648 = vadd.f32 %v647, %v633
        %v649 = vadd.f32 %v648, %v634
        %v650 = vadd.f32 %v649, %v635
        %v651 = vadd.f32 %v650, %v636
        %v652 = vadd.f32 %v651, %v637
        %v653 = vadd.f32 %v652, %v638
        %v654 = vadd.f32 %v653, %v639
        %v655 = vadd.f32 %v654, %v640
        %v656 = vadd.f32 %v655, %v641
        %v657 = vadd.f32 %v656, %v642
        %v658 = vadd.f32 %v657, %v643
        %v659 = vadd.f32 %v658, %v644
        %v660 = vadd.f32 %v659, %v645
        %v661 = vadd.f32 %v660, %v646
        %v662 = vrot.slane %v661, 4
        %v663 = vadd.f32 %v661, %v662
        %v664 = vrot.slane %v663, 2
        %v665 = vadd.f32 %v663, %v664
        %v666 = vrot.slane %v665, 1
        %v667 = vadd.f32 %v665, %v666
        %s668 = sld [smem:[#allocation2]]
        %v669 = vstv %s668
        %v670 = vadd.f32 %v667, %v669
        %v671 = vxor.u32 %v670, 2147483648
        %v672 = vmul.f32 %v671, 1.442695
        %v673 = vpow.pop %v672
        %v674 = vadd.f32 %v673, 1.0
        %v675 = vrcp.pop %v674
        %v676 = vmul.f32 1.0, %v675
        %677 = vst [vmem:[%s215] sm:$0xff] %v511
        %678 = vst [vmem:[%s215 + $0x8] sm:$0xff] %v516
        %679 = vst [vmem:[%s215 + $0x10] sm:$0x1] %v676
        %s680 = sand.u32 %s135, 1
        %s681 = sand.u32 %s135, 1
        %s682 = smul.addr %s681, 24
        %s683 = scalar_lea.vmem [#allocation3], %s682
        // Predicated region
        $region41: #{gated_attention_forward.1} parent=39 // pred_check
          %p684 = pneg %p145
        $region42: #{gated_attention_forward.1} parent=39 // pred_check_branch
          %686 = sbr.rel (%p684) target = $region44
        $region43: #{gated_attention_forward.1} parent=39 // pred_region
          %s687 = smul.addr %s17, 8
          %s688 = scalar_lea.vmem %s5, %s687
          // Predicated region
          $region45: #{gated_attention_forward.1} parent=43 // pred_check
            _
          $region46: #{gated_attention_forward.1} parent=43 // pred_check_branch
            %690 = sbr.rel (0) target = $region48
          $region47: #{gated_attention_forward.1} parent=43 // pred_region
            // Predicated region
            $region49: #{gated_attention_forward.1} parent=47 // pred_check
              _
            $region50: #{gated_attention_forward.1} parent=47 // pred_check_branch
              %692 = sbr.rel (0) target = $region52
            $region51: #{gated_attention_forward.1} parent=47 // pred_region
              // Predicated region
              $region64: #{gated_attention_forward.1} parent=51 // pred_check
                _
              $region65: #{gated_attention_forward.1} parent=51 // pred_check_branch
                %712 = sbr.rel (0) target = $region67
              $region66: #{gated_attention_forward.1} parent=51 // pred_region
                loop: start=0, step=1, limit=1
                $region68: #{gated_attention_forward.1} parent=66 // loop_pre_header
                  _
                $region69: #{gated_attention_forward.1} parent=66 // loop_header
                  %s714 = sphi 0, %s718
                  %p715 = scmp.ge.s32.totalorder %s714, 1
                  %s719 = sphi %s683, %s683
                  %s720 = sphi %s688, %s688
                $region70: #{gated_attention_forward.1} parent=66 // loop_header_branch
                  %717 = sbr.rel (%p715) target = $region74
                $region71: #{gated_attention_forward.1} parent=66 // loop_body
                  %v721 = vld [vmem:[%s719] sm:$0xff]
                  %722 = vst [vmem:[%s720] sm:$0xff] %v721
                  %v723 = vld [vmem:[%s719 + $0x8] sm:$0xff]
                  %724 = vst [vmem:[%s720 + $0x10] sm:$0xff] %v723
                  %v725 = vld [vmem:[%s719 + $0x10] sm:$0xff]
                  %726 = vst [vmem:[%s720 + $0x20] sm:$0xff] %v725
                $region72: #{gated_attention_forward.1} parent=66 // loop_footer
                  %s718 = sadd.s32 1, %s714
                $region73: #{gated_attention_forward.1} parent=66 // loop_footer_branch
                  %713 = sbr.rel target = $region69
                $region74: #{gated_attention_forward.1} parent=66 // loop_exit
                  _
              $region67: #{gated_attention_forward.1} parent=51 // pred_fallthru
                _
              // Predicated region
              $region75: #{gated_attention_forward.1} parent=51 // pred_check
                _
              $region76: #{gated_attention_forward.1} parent=51 // pred_check_branch
                %728 = sbr.rel target = $region78
              $region77: #{gated_attention_forward.1} parent=51 // pred_region
                _
              $region78: #{gated_attention_forward.1} parent=51 // pred_fallthru
                _
            $region52: #{gated_attention_forward.1} parent=47 // pred_fallthru
              _
            // Predicated region
            $region53: #{gated_attention_forward.1} parent=47 // pred_check
              _
            $region54: #{gated_attention_forward.1} parent=47 // pred_check_branch
              %694 = sbr.rel target = $region56
            $region55: #{gated_attention_forward.1} parent=47 // pred_region
              %s696 = ssub.s32 256, 1
              loop: start=0, step=1, limit=1
              $region57: #{gated_attention_forward.1} parent=55 // loop_pre_header
                _
              $region58: #{gated_attention_forward.1} parent=55 // loop_header
                %s698 = sphi 0, %s702
                %p699 = scmp.ge.s32.totalorder %s698, 1
                %s703 = sphi %s683, %s683
                %s704 = sphi %s688, %s688
              $region59: #{gated_attention_forward.1} parent=55 // loop_header_branch
                %701 = sbr.rel (%p699) target = $region63
              $region60: #{gated_attention_forward.1} parent=55 // loop_body
                %v705 = vld [vmem:[%s703] sm:%s696]
                %706 = vst [vmem:[%s704] sm:%s696] %v705
                %v707 = vld [vmem:[%s703 + $0x8] sm:%s696]
                %708 = vst [vmem:[%s704 + $0x10] sm:%s696] %v707
                %v709 = vld [vmem:[%s703 + $0x10] sm:%s696]
                %710 = vst [vmem:[%s704 + $0x20] sm:%s696] %v709
              $region61: #{gated_attention_forward.1} parent=55 // loop_footer
                %s702 = sadd.s32 1, %s698
              $region62: #{gated_attention_forward.1} parent=55 // loop_footer_branch
                %697 = sbr.rel target = $region58
              $region63: #{gated_attention_forward.1} parent=55 // loop_exit
                _
            $region56: #{gated_attention_forward.1} parent=47 // pred_fallthru
              _
          $region48: #{gated_attention_forward.1} parent=43 // pred_fallthru
            _
          %729 = vnop
        $region44: #{gated_attention_forward.1} parent=39 // pred_fallthru
          _
      $region40: #{gated_attention_forward.1} parent=5 // pred_fallthru
        _
      %p730 = scmp.le.s32.totalorder 2, %s12
      // Predicated region
      $region79: #{gated_attention_forward.1} parent=5 // pred_check
        %p731 = pneg %p730
      $region80: #{gated_attention_forward.1} parent=5 // pred_check_branch
        %733 = sbr.rel (%p731) target = $region82
      $region81: #{gated_attention_forward.1} parent=5 // pred_region
        %s734 = ssub.s32 %s12, 2
        // Predicated region
        $region83: #{gated_attention_forward.1} parent=81 // pred_check
          %p735 = pneg %p151
        $region84: #{gated_attention_forward.1} parent=81 // pred_check_branch
          %737 = sbr.rel (%p735) target = $region86
        $region85: #{gated_attention_forward.1} parent=81 // pred_region
          %s738 = sand.u32 %s136, 1
          %s739 = sand.u32 %s136, 1
          %s740 = smul.addr %s739, 24
          %s741 = scalar_lea.vmem [#allocation3], %s740
        $region86: #{gated_attention_forward.1} parent=81 // pred_fallthru
          _
      $region82: #{gated_attention_forward.1} parent=5 // pred_fallthru
        _
    $region6: #{gated_attention_forward.1} parent=1 // loop_footer
      %s16 = sadd.s32 1, %s12
    $region7: #{gated_attention_forward.1} parent=1 // loop_footer_branch
      %11 = sbr.rel target = $region3
    $region8: #{gated_attention_forward.1} parent=1 // loop_exit
      _

</llo_original>
